<compile_context>
chip_gen: v7x
topology: tpu7x:2x2x1
jax: 0.10.0
libtpu: 0.0.40
codegen_flags: <defaults>
</compile_context>

<pallas_src>
import jax
import jax.numpy as jnp
import numpy as np
from jax.experimental import pallas as pl
from jax.experimental.pallas import tpu as pltpu


_MIB = 1024 * 1024
_NUM_GROUPS = 2   # leading "parallel" grid axis (both TCs on v7x)


def _cdiv(a, d):
    return -(-a // d)


def _vmem_capacity_bytes():
    """Best-effort per-core VMEM query; conservative fallback if unavailable."""
    try:
        info = pltpu.get_tpu_info()
        cap = getattr(info, "vmem_capacity_bytes", None)
        if cap:
            return int(cap)
    except Exception:
        pass
    return 64 * _MIB


def _make_kernel(w, rows, tr, steps, even_w):
    wf = float(w)

    def kernel(x_ref, t_ref, o_ref, acc_ref):
        # Reset the accumulator at the start of each group's reduction sweep.
        @pl.when(pl.program_id(1) == 0)
        def _init():
            acc_ref[...] = jnp.zeros_like(acc_ref)

        # Row-validity mask.  The global block id uses the *unclamped* program
        # ids so both the ragged tail and any dummy (re-read) block on an
        # uneven group split contribute exactly zero.
        blk = pl.program_id(0) * steps + pl.program_id(1)
        valid = rows - blk * tr                                   # int32 scalar
        row_ids = jax.lax.broadcasted_iota(jnp.int32, (tr, w), 0)

        d = x_ref[...].astype(jnp.float32) - t_ref[...].astype(jnp.float32)
        d = jnp.where(row_ids < valid, d, 0.0)

        # One-sided Parseval along W (no DFT matmul needed):
        #   sum_k |rfft_W(d)|^2 = 0.5*(W*sum d^2 + (sum d)^2 + [W even]*(altsum)^2)
        sq_lane = jnp.sum(d * d, axis=0, keepdims=True)           # (1, W)
        sq = jnp.sum(sq_lane, axis=1, keepdims=True)              # (1, 1)

        rs = jnp.sum(d, axis=1, keepdims=True)                    # (tr, 1)
        s0 = jnp.sum(rs * rs, axis=0, keepdims=True)              # (1, 1)

        contrib = wf * sq + s0
        if even_w:
            lane = jax.lax.broadcasted_iota(jnp.int32, (tr, w), 1)
            sign = jnp.where(lane % 2 == 0, 1.0, -1.0)            # +1,-1,+1,...
            ns = jnp.sum(d * sign, axis=1, keepdims=True)         # (tr, 1)
            contrib = contrib + jnp.sum(ns * ns, axis=0, keepdims=True)

        acc_ref[...] += contrib

        # Emit this group's partial on its last reduction step.
        @pl.when(pl.program_id(1) == pl.num_programs(1) - 1)
        def _finalize():
            o_ref[0] = acc_ref[...]

    return kernel


@jax.jit
def frequency_loss(x, target):
    b, c, h, w = x.shape
    rows = b * c * h

    x2 = x.reshape(rows, w)
    t2 = target.reshape(rows, w)
    itemsize = x2.dtype.itemsize

    # Generation-aware tiling / VMEM budget.
    vmem_cap = _vmem_capacity_bytes()
    if vmem_cap >= 128 * _MIB:           # v5e / v6e: 128 MiB VMEM per core
        target_block_bytes = 8 * _MIB
        vmem_limit = 96 * _MIB
    else:                                # v7x (64 MiB per core) or unknown
        target_block_bytes = 4 * _MIB
        vmem_limit = 48 * _MIB

    sub = 8 * max(1, 4 // itemsize)      # sublane multiple: 8 f32 / 16 bf16
    if rows <= sub:
        tr = rows                        # block spans the full row extent
    else:
        tr_from_rows = _cdiv(_cdiv(rows, _NUM_GROUPS), sub) * sub
        tr_from_bytes = max(sub, (target_block_bytes // (w * itemsize)) // sub * sub)
        tr = min(tr_from_rows, tr_from_bytes)

    total_blocks = _cdiv(rows, tr)
    num_groups = max(1, min(_NUM_GROUPS, total_blocks))
    steps = _cdiv(total_blocks, num_groups)
    last_block = total_blocks - 1

    # No wrapper-side jnp.pad: the tail / dummy blocks are masked in-kernel.
    # The clamp keeps every DMA in bounds.
    def row_map(g, i):
        return (jnp.minimum(g * steps + i, last_block), 0)

    kernel = _make_kernel(w, rows, tr, steps, even_w=(w % 2 == 0))

    cost = pl.CostEstimate(
        flops=int(8 * rows * w),
        transcendentals=0,
        bytes_accessed=int(2 * rows * w * itemsize + num_groups * 4),
    )

    partials = pl.pallas_call(
        kernel,
        out_shape=jax.ShapeDtypeStruct((num_groups, 1, 1), jnp.float32),
        grid_spec=pltpu.PrefetchScalarGridSpec(
            num_scalar_prefetch=0,
            grid=(num_groups, steps),
            in_specs=[
                pl.BlockSpec((tr, w), row_map),     # x rows
                pl.BlockSpec((tr, w), row_map),     # target rows
            ],
            out_specs=pl.BlockSpec((1, 1, 1), lambda g, i: (g, 0, 0)),
            scratch_shapes=[pltpu.VMEM((1, 1), jnp.float32)],
        ),
        compiler_params=pltpu.CompilerParams(
            dimension_semantics=("parallel", "arbitrary"),
            vmem_limit_bytes=vmem_limit,
        ),
        cost_estimate=cost,
    )(x2, t2)

    # 0.5 from the one-sided Parseval identity on W, H from Parseval on the
    # full H-axis FFT, 1/B for the batch mean of per-sample sums.
    return jnp.sum(partials) * (0.5 * float(h) / float(b))


def _reference_numpy(x, target):
    """f64 reference matching torch.rfft(signal_ndim=2, onesided=True) semantics."""
    xf = np.fft.rfft2(np.asarray(x, dtype=np.float64), axes=(-2, -1))
    tf = np.fft.rfft2(np.asarray(target, dtype=np.float64), axes=(-2, -1))
    d = xf - tf
    per_sample = np.sum(np.abs(d) ** 2, axis=(1, 2, 3))
    return float(np.mean(per_sample))


if __name__ == "__main__":
    key = jax.random.PRNGKey(0)
    kx, kt = jax.random.split(key)
    x = jax.random.normal(kx, (2, 4, 16, 16), dtype=jnp.float32)
    target = jax.random.normal(kt, (2, 4, 16, 16), dtype=jnp.float32)

    out = jax.block_until_ready(frequency_loss(x, target))
    ref = _reference_numpy(x, target)

    rel_err = abs(float(out) - ref) / max(abs(ref), 1e-12)
    if rel_err < 1e-3:
        print("KERNEL_OK")
    else:
        print(f"MISMATCH: kernel={float(out)}, ref={ref}, rel_err={rel_err}")
</pallas_src>

<mosaic_0001>
module attributes {stable_mosaic.version = 11 : i64} {
  func.func @kernel(%arg0: i32, %arg1: i32, %arg2: memref<64x16xf32, #tpu.memory_space<vmem>>, %arg3: memref<64x16xf32, #tpu.memory_space<vmem>>, %arg4: memref<1x1x1xf32, #tpu.memory_space<vmem>>, %arg5: memref<1x1xf32, #tpu.memory_space<vmem>>) attributes {dimension_semantics = [#tpu.dimension_semantics<parallel>, #tpu.dimension_semantics<arbitrary>], iteration_bounds = array<i64: 2, 1>, scalar_prefetch = 0 : i64, scratch_operands = 1 : i64, tpu.core_type = #tpu.core_type<tc>, window_params = [{transform_indices = @transform_0, window_bounds = array<i64: 64, 16>}, {transform_indices = @transform_1, window_bounds = array<i64: 64, 16>}, {transform_indices = @transform_2, window_bounds = array<i64: 1, 1, 1>}]} {
    %c0_i32 = arith.constant 0 : i32
    %0 = arith.cmpi eq, %arg1, %c0_i32 : i32
    %1 = arith.extui %0 : i1 to i32
    %c0_i32_0 = arith.constant 0 : i32
    %2 = arith.cmpi ne, %1, %c0_i32_0 : i32
    scf.if %2 {
      %cst_25 = arith.constant 0.000000e+00 : f32
      %63 = vector.broadcast %cst_25 : f32 to vector<1x1xf32>
      %c0_26 = arith.constant 0 : index
      %c0_27 = arith.constant 0 : index
      %64 = vector.load %arg5[%c0_26, %c0_27] : memref<1x1xf32, #tpu.memory_space<vmem>>, vector<1x1xf32>
      tpu.vector_store %arg5[%c0_26, %c0_27], %63 {strides = array<i32>} : memref<1x1xf32, #tpu.memory_space<vmem>>, vector<1x1xf32>,
    } else {
    }
    %c1_i32 = arith.constant 1 : i32
    %3 = arith.muli %arg0, %c1_i32 : i32
    %4 = arith.addi %3, %arg1 : i32
    %c64_i32 = arith.constant 64 : i32
    %5 = arith.muli %4, %c64_i32 : i32
    %c128_i32 = arith.constant 128 : i32
    %6 = arith.subi %c128_i32, %5 : i32
    %7 = tpu.iota {dimensions = array<i32: 0>} : vector<64x16xi32>
    %c0 = arith.constant 0 : index
    %c0_1 = arith.constant 0 : index
    %8 = vector.load %arg2[%c0, %c0_1] : memref<64x16xf32, #tpu.memory_space<vmem>>, vector<64x16xf32>
    %c0_2 = arith.constant 0 : index
    %c0_3 = arith.constant 0 : index
    %9 = vector.load %arg3[%c0_2, %c0_3] : memref<64x16xf32, #tpu.memory_space<vmem>>, vector<64x16xf32>
    %10 = arith.subf %8, %9 : vector<64x16xf32>
    %11 = vector.broadcast %6 : i32 to vector<64x16xi32>
    %12 = arith.cmpi slt, %7, %11 : vector<64x16xi32>
    %cst = arith.constant 0.000000e+00 : f32
    %13 = vector.broadcast %cst : f32 to vector<64x16xf32>
    %14 = arith.select %12, %10, %13 : vector<64x16xi1>, vector<64x16xf32>
    %15 = arith.mulf %14, %14 : vector<64x16xf32>
    %cst_4 = arith.constant dense<0.000000e+00> : vector<16xf32>
    %16 = vector.multi_reduction <add>, %15, %cst_4 [0] : vector<64x16xf32> to vector<16xf32>
    %17 = vector.shape_cast %16 : vector<16xf32> to vector<1x16xf32>
    %cst_5 = arith.constant dense<0.000000e+00> : vector<1xf32>
    %18 = vector.multi_reduction <add>, %17, %cst_5 [1] : vector<1x16xf32> to vector<1xf32>
    %19 = vector.shape_cast %18 : vector<1xf32> to vector<1x1xf32>
    %cst_6 = arith.constant dense<0.000000e+00> : vector<64xf32>
    %20 = vector.multi_reduction <add>, %14, %cst_6 [1] : vector<64x16xf32> to vector<64xf32>
    %21 = vector.shape_cast %20 : vector<64xf32> to vector<64x1xf32>
    %22 = arith.mulf %21, %21 : vector<64x1xf32>
    %cst_7 = arith.constant dense<0.000000e+00> : vector<1xf32>
    %23 = vector.multi_reduction <add>, %22, %cst_7 [0] : vector<64x1xf32> to vector<1xf32>
    %24 = vector.shape_cast %23 : vector<1xf32> to vector<1x1xf32>
    %cst_8 = arith.constant 1.600000e+01 : f32
    %25 = vector.broadcast %cst_8 : f32 to vector<1x1xf32>
    %26 = arith.mulf %25, %19 : vector<1x1xf32>
    %27 = arith.addf %26, %24 : vector<1x1xf32>
    %28 = tpu.iota {dimensions = array<i32: 1>} : vector<64x16xi32>
    %c2_i32 = arith.constant 2 : i32
    %c0_i32_9 = arith.constant 0 : i32
    %29 = arith.cmpi eq, %c2_i32, %c0_i32_9 : i32
    %c1_i32_10 = arith.constant 1 : i32
    %30 = arith.select %29, %c1_i32_10, %c2_i32 : i32
    %31 = vector.broadcast %30 : i32 to vector<64x16xi32>
    %32 = arith.remsi %28, %31 : vector<64x16xi32>
    %c0_i32_11 = arith.constant 0 : i32
    %33 = vector.broadcast %c0_i32_11 : i32 to vector<64x16xi32>
    %34 = arith.cmpi ne, %32, %33 : vector<64x16xi32>
    %c0_i32_12 = arith.constant 0 : i32
    %35 = vector.broadcast %c0_i32_12 : i32 to vector<64x16xi32>
    %36 = arith.cmpi slt, %32, %35 : vector<64x16xi32>
    %c0_i32_13 = arith.constant 0 : i32
    %37 = arith.cmpi slt, %30, %c0_i32_13 : i32
    %38 = vector.broadcast %37 : i1 to vector<64x16xi1>
    %39 = vector.broadcast %38 : vector<64x16xi1> to vector<64x16xi1>
    %40 = arith.xori %36, %39 : vector<64x16xi1>
    %41 = arith.andi %40, %34 : vector<64x16xi1>
    %42 = vector.broadcast %30 : i32 to vector<64x16xi32>
    %43 = arith.addi %32, %42 : vector<64x16xi32>
    %44 = arith.select %41, %43, %32 : vector<64x16xi1>, vector<64x16xi32>
    %c0_i32_14 = arith.constant 0 : i32
    %45 = vector.broadcast %c0_i32_14 : i32 to vector<64x16xi32>
    %46 = arith.cmpi eq, %44, %45 : vector<64x16xi32>
    %cst_15 = arith.constant 1.000000e+00 : f32
    %cst_16 = arith.constant -1.000000e+00 : f32
    %47 = vector.broadcast %cst_15 : f32 to vector<64x16xf32>
    %48 = vector.broadcast %cst_16 : f32 to vector<64x16xf32>
    %49 = arith.select %46, %47, %48 : vector<64x16xi1>, vector<64x16xf32>
    %50 = arith.mulf %14, %49 : vector<64x16xf32>
    %cst_17 = arith.constant dense<0.000000e+00> : vector<64xf32>
    %51 = vector.multi_reduction <add>, %50, %cst_17 [1] : vector<64x16xf32> to vector<64xf32>
    %52 = vector.shape_cast %51 : vector<64xf32> to vector<64x1xf32>
    %53 = arith.mulf %52, %52 : vector<64x1xf32>
    %cst_18 = arith.constant dense<0.000000e+00> : vector<1xf32>
    %54 = vector.multi_reduction <add>, %53, %cst_18 [0] : vector<64x1xf32> to vector<1xf32>
    %55 = vector.shape_cast %54 : vector<1xf32> to vector<1x1xf32>
    %56 = arith.addf %27, %55 : vector<1x1xf32>
    %c0_19 = arith.constant 0 : index
    %c0_20 = arith.constant 0 : index
    %57 = vector.load %arg5[%c0_19, %c0_20] : memref<1x1xf32, #tpu.memory_space<vmem>>, vector<1x1xf32>
    %58 = arith.addf %57, %56 : vector<1x1xf32>
    %c0_21 = arith.constant 0 : index
    %c0_22 = arith.constant 0 : index
    %59 = vector.load %arg5[%c0_21, %c0_22] : memref<1x1xf32, #tpu.memory_space<vmem>>, vector<1x1xf32>
    tpu.vector_store %arg5[%c0_21, %c0_22], %58 {strides = array<i32>} : memref<1x1xf32, #tpu.memory_space<vmem>>, vector<1x1xf32>,
    %c0_i32_23 = arith.constant 0 : i32
    %60 = arith.cmpi eq, %arg1, %c0_i32_23 : i32
    %61 = arith.extui %60 : i1 to i32
    %c0_i32_24 = arith.constant 0 : i32
    %62 = arith.cmpi ne, %61, %c0_i32_24 : i32
    scf.if %62 {
      %c0_25 = arith.constant 0 : index
      %c0_26 = arith.constant 0 : index
      %63 = vector.load %arg5[%c0_25, %c0_26] : memref<1x1xf32, #tpu.memory_space<vmem>>, vector<1x1xf32>
      %c0_27 = arith.constant 0 : index
      %c0_28 = arith.constant 0 : index
      %c0_29 = arith.constant 0 : index
      %64 = vector.load %arg4[%c0_27, %c0_28, %c0_29] : memref<1x1x1xf32, #tpu.memory_space<vmem>>, vector<1x1x1xf32>
      %65 = vector.shape_cast %64 : vector<1x1x1xf32> to vector<1x1xf32>
      %66 = vector.shape_cast %63 : vector<1x1xf32> to vector<1x1x1xf32>
      tpu.vector_store %arg4[%c0_27, %c0_28, %c0_29], %66 {strides = array<i32>} : memref<1x1x1xf32, #tpu.memory_space<vmem>>, vector<1x1x1xf32>,
    } else {
    }
    return
  }
  func.func @transform_0(%arg0: i32, %arg1: i32) -> (i32, i32) {
    %c1_i32 = arith.constant 1 : i32
    %0 = arith.muli %arg0, %c1_i32 : i32
    %1 = arith.addi %0, %arg1 : i32
    %c1_i32_0 = arith.constant 1 : i32
    %2 = arith.minsi %1, %c1_i32_0 : i32
    %c0_i32 = arith.constant 0 : i32
    %c0_i32_1 = arith.constant 0 : i32
    return %2, %c0_i32 : i32, i32
  }
  func.func @transform_1(%arg0: i32, %arg1: i32) -> (i32, i32) {
    %c1_i32 = arith.constant 1 : i32
    %0 = arith.muli %arg0, %c1_i32 : i32
    %1 = arith.addi %0, %arg1 : i32
    %c1_i32_0 = arith.constant 1 : i32
    %2 = arith.minsi %1, %c1_i32_0 : i32
    %c0_i32 = arith.constant 0 : i32
    %c0_i32_1 = arith.constant 0 : i32
    return %2, %c0_i32 : i32, i32
  }
  func.func @transform_2(%arg0: i32, %arg1: i32) -> (i32, i32, i32) {
    %c0_i32 = arith.constant 0 : i32
    %c0_i32_0 = arith.constant 0 : i32
    %c0_i32_1 = arith.constant 0 : i32
    return %arg0, %c0_i32, %c0_i32_0 : i32, i32, i32
  }
}

</mosaic_0001>

<llo_original>
// kernel: frequency_loss.1
$region0: #{frequency_loss.1}
  #allocation0 [shape = 'u32[]', space=smem, size = 0x4, offset = 0x4, fixed_abs, tag = 'smem constant byte address 0x4 - core index']
  #allocation1 [shape = 'u32[144,128]{1,0:T(1,128)}', space=vmem, size = 0x12000, scoped, tag = 'internal scratch']
  #allocation2 [shape = 'f32[1,1]{1,0:T(1,128)}', space=vmem, size = 0x200, scoped, tag = 'scratch operand']
  %s0 = inlined_call_operand.hbm [shape: f32[128,16], index: 0, kind: input, shape index: {}]
  %s1 = inlined_call_operand.hbm [shape: f32[128,16], index: 1, kind: input, shape index: {}]
  %s2 = inlined_call_operand.vmem [shape: f32[2,1,1], index: 2, kind: output, shape index: {}]
  %s3 = sld [smem:[#allocation0]]
  $region57: #{frequency_loss.1} parent=0
    _
  %s5 = ssub.s32 1, %s3
  %s6 = scalar_select 0, %s5, %s3
  $region1: #{frequency_loss.1} parent=0
    #allocation3 [shape = 'u8[65536]{0}', space=vmem, size = 0x10000, scoped, tag = 'input window, operand 0']
    #allocation4 [shape = 's32[2]{0}', space=sflag, size = 0x8, scoped, tag = 'scoped memory for frequency_loss.1']
    #allocation5 [shape = 'u8[65536]{0}', space=vmem, size = 0x10000, scoped, tag = 'input window, operand 1']
    #allocation6 [shape = 's32[2]{0}', space=sflag, size = 0x8, scoped, tag = 'scoped memory for frequency_loss.1']
    %7 = vsyncpa [#allocation4], 0
    %s8 = scalar_lea.sflag [#allocation4], 1
    %9 = vsyncpa %s8, 0
    %10 = vsyncpa [#allocation6], 0
    %s11 = scalar_lea.sflag [#allocation6], 1
    %12 = vsyncpa %s11, 0
    loop: start=0, step=1, limit=4
    $region2: #{frequency_loss.1} parent=1 // loop_pre_header
      _
    $region3: #{frequency_loss.1} parent=1 // loop_header
      %s14 = sphi 0, %s18
      %p15 = scmp.ge.s32.totalorder %s14, 4
      %s21 = sphi 0, %s33
      %s22 = sphi 0, %s29
      %s23 = sphi 0, %s21
      %s24 = sphi 0, %s22
      %s25 = sphi 0, %s23
      %s26 = sphi 0, %s24
      %s42 = sphi 0, %s44
      %s45 = sphi 0, %s42
      %s46 = sphi 0, %s45
      %s62 = sphi 0, %s46
      %s74 = sphi 0, %s76
      %s77 = sphi 0, %s74
      %s78 = sphi 0, %s77
      %s94 = sphi 0, %s78
      %s100 = sphi 0, %s102
      %s103 = sphi 0, %s100
      %s104 = sphi 0, %s103
      %s120 = sphi 0, %s104
    $region4: #{frequency_loss.1} parent=1 // loop_header_branch
      %17 = sbr.rel (%p15) target = $region8
    $region5: #{frequency_loss.1} parent=1 // loop_body
      %s19 = ssub.s32 %s14, 1
      %s20 = ssub.s32 %s14, 2
      %s27 = sadd.s32 1, %s22
      %p28 = scmp.ge.s32.totalorder %s27, 1
      %s29 = scalar_select %p28, 0, %s27
      %s30 = sadd.s32 1, %s21
      %s31 = scalar_select %p28, %s30, %s21
      %p32 = scmp.ge.s32.totalorder %s31, 2
      %s33 = scalar_select %p32, 0, %s31
      %s34 = sadd.s32 %s21, %s22
      %p35 = scmp.lt.s32.totalorder %s34, 1
      %s36 = scalar_select %p35, %s34, 1
      %s37 = sadd.s32 %s33, %s29
      %p38 = scmp.lt.s32.totalorder %s37, 1
      %s39 = scalar_select %p38, %s37, 1
      %s40 = ssub.s32 %s36, %s39
      %p41 = scmp.eq.s32.totalorder %s40, 0
      %s43 = sadd.s32 %s42, 1
      %s44 = scalar_select %p41, %s42, %s43
      %p47 = pneg %p41
      %p48 = scmp.eq.s32.totalorder %s14, 1
      %p49 = por %p47, %p48
      %p50 = scmp.ne.s32.totalorder %s42, %s45
      %p51 = scmp.eq.s32.totalorder %s14, 0
      %p52 = por %p50, %p51
      %p53 = scmp.ne.s32.totalorder %s42, %s45
      %p54 = scmp.eq.s32.totalorder %s19, 1
      %p55 = por %p53, %p54
      %p56 = scmp.ne.s32.totalorder %s45, %s46
      %p57 = scmp.eq.s32.totalorder %s19, 0
      %p58 = por %p56, %p57
      %p59 = scmp.ne.s32.totalorder %s45, %s46
      %p60 = scmp.eq.s32.totalorder %s20, 1
      %p61 = por %p59, %p60
      %p63 = scmp.ne.s32.totalorder %s46, %s62
      %p64 = scmp.eq.s32.totalorder %s20, 0
      %p65 = por %p63, %p64
      %s66 = sadd.s32 %s21, %s22
      %p67 = scmp.lt.s32.totalorder %s66, 1
      %s68 = scalar_select %p67, %s66, 1
      %s69 = sadd.s32 %s33, %s29
      %p70 = scmp.lt.s32.totalorder %s69, 1
      %s71 = scalar_select %p70, %s69, 1
      %s72 = ssub.s32 %s68, %s71
      %p73 = scmp.eq.s32.totalorder %s72, 0
      %s75 = sadd.s32 %s74, 1
      %s76 = scalar_select %p73, %s74, %s75
      %p79 = pneg %p73
      %p80 = scmp.eq.s32.totalorder %s14, 1
      %p81 = por %p79, %p80
      %p82 = scmp.ne.s32.totalorder %s74, %s77
      %p83 = scmp.eq.s32.totalorder %s14, 0
      %p84 = por %p82, %p83
      %p85 = scmp.ne.s32.totalorder %s74, %s77
      %p86 = scmp.eq.s32.totalorder %s19, 1
      %p87 = por %p85, %p86
      %p88 = scmp.ne.s32.totalorder %s77, %s78
      %p89 = scmp.eq.s32.totalorder %s19, 0
      %p90 = por %p88, %p89
      %p91 = scmp.ne.s32.totalorder %s77, %s78
      %p92 = scmp.eq.s32.totalorder %s20, 1
      %p93 = por %p91, %p92
      %p95 = scmp.ne.s32.totalorder %s78, %s94
      %p96 = scmp.eq.s32.totalorder %s20, 0
      %p97 = por %p95, %p96
      %s98 = ssub.s32 %s21, %s33
      %p99 = scmp.eq.s32.totalorder %s98, 0
      %s101 = sadd.s32 %s100, 1
      %s102 = scalar_select %p99, %s100, %s101
      %p105 = pneg %p99
      %p106 = scmp.eq.s32.totalorder %s14, 1
      %p107 = por %p105, %p106
      %p108 = scmp.ne.s32.totalorder %s100, %s103
      %p109 = scmp.eq.s32.totalorder %s14, 0
      %p110 = por %p108, %p109
      %p111 = scmp.ne.s32.totalorder %s100, %s103
      %p112 = scmp.eq.s32.totalorder %s19, 1
      %p113 = por %p111, %p112
      %p114 = scmp.ne.s32.totalorder %s103, %s104
      %p115 = scmp.eq.s32.totalorder %s19, 0
      %p116 = por %p114, %p115
      %p117 = scmp.ne.s32.totalorder %s103, %s104
      %p118 = scmp.eq.s32.totalorder %s20, 1
      %p119 = por %p117, %p118
      %p121 = scmp.ne.s32.totalorder %s104, %s120
      %p122 = scmp.eq.s32.totalorder %s20, 0
      %p123 = por %p121, %p122
      %p124 = scmp.le.s32.totalorder 1, %s14
      %p125 = scmp.lt.s32.totalorder %s14, 3
      %p126 = pnand %p124, %p125
      %p127 = pneg %p126
      // Predicated region
      $region9: #{frequency_loss.1} parent=5 // pred_check
        _
      $region10: #{frequency_loss.1} parent=5 // pred_check_branch
        %129 = sbr.rel (%p126) target = $region12
      $region11: #{frequency_loss.1} parent=5 // pred_region
        %s130 = ssub.s32 %s14, 1
      $region12: #{frequency_loss.1} parent=5 // pred_fallthru
        _
      %p131 = scmp.lt.s32.totalorder %s14, 2
      // Predicated region
      $region13: #{frequency_loss.1} parent=5 // pred_check
        %p132 = pneg %p131
      $region14: #{frequency_loss.1} parent=5 // pred_check_branch
        %134 = sbr.rel (%p132) target = $region16
      $region15: #{frequency_loss.1} parent=5 // pred_region
        // Predicated region
        $region17: #{frequency_loss.1} parent=15 // pred_check
          %p135 = pneg %p52
        $region18: #{frequency_loss.1} parent=15 // pred_check_branch
          %137 = sbr.rel (%p135) target = $region20
        $region19: #{frequency_loss.1} parent=15 // pred_region
          %s138 = sand.u32 %s42, 1
          %s139 = scalar_lea.sflag [#allocation4], %s138
          %s140 = sand.u32 %s42, 1
          %s141 = smul.addr %s140, 64
          %s142 = scalar_lea.vmem [#allocation3], %s141
          %s143 = sadd.s32 %s21, %s22
          %p144 = scmp.lt.s32.totalorder %s143, 1
          %s145 = scalar_select %p144, %s143, 1
          %s146 = smul.u32 8, %s145
          %s148 = ssub.s32 1024, 1024
          %149 = vsyncadd %s139, %s148
          %s150 = smul.addr %s146, 128
          %s151 = scalar_lea.hbm %s0, %s150
          %s152 = sshll.u32 %s142, 4
          %s153 = int_to_ptr.vmem [resolvable:$true] %s152
          %158 = dma.hbm_to_vmem [thread:$0]  %s151, 1024, %s153, %s139, 128, 128, 8
        $region20: #{frequency_loss.1} parent=15 // pred_fallthru
          _
        // Predicated region
        $region21: #{frequency_loss.1} parent=15 // pred_check
          %p159 = pneg %p84
        $region22: #{frequency_loss.1} parent=15 // pred_check_branch
          %161 = sbr.rel (%p159) target = $region24
        $region23: #{frequency_loss.1} parent=15 // pred_region
          %s162 = sand.u32 %s74, 1
          %s163 = scalar_lea.sflag [#allocation6], %s162
          %s164 = sand.u32 %s74, 1
          %s165 = smul.addr %s164, 64
          %s166 = scalar_lea.vmem [#allocation5], %s165
          %s167 = sadd.s32 %s21, %s22
          %p168 = scmp.lt.s32.totalorder %s167, 1
          %s169 = scalar_select %p168, %s167, 1
          %s170 = smul.u32 8, %s169
          %s172 = ssub.s32 1024, 1024
          %173 = vsyncadd %s163, %s172
          %s174 = smul.addr %s170, 128
          %s175 = scalar_lea.hbm %s1, %s174
          %s176 = sshll.u32 %s166, 4
          %s177 = int_to_ptr.vmem [resolvable:$true] %s176
          %182 = dma.hbm_to_vmem [thread:$0]  %s175, 1024, %s177, %s163, 128, 128, 8
        $region24: #{frequency_loss.1} parent=15 // pred_fallthru
          _
      $region16: #{frequency_loss.1} parent=5 // pred_fallthru
        _
      %p183 = scmp.le.s32.totalorder 1, %s14
      %p184 = scmp.lt.s32.totalorder %s14, 3
      %p185 = pnand %p183, %p184
      %p186 = pneg %p185
      // Predicated region
      $region25: #{frequency_loss.1} parent=5 // pred_check
        _
      $region26: #{frequency_loss.1} parent=5 // pred_check_branch
        %188 = sbr.rel (%p185) target = $region28
      $region27: #{frequency_loss.1} parent=5 // pred_region
        %s189 = ssub.s32 %s14, 1
        %s190 = sand.u32 %s45, 1
        %s191 = scalar_lea.sflag [#allocation4], %s190
        %s192 = sand.u32 %s45, 1
        %s193 = smul.addr %s192, 64
        %s194 = scalar_lea.vmem [#allocation3], %s193
        // Predicated region
        $region29: #{frequency_loss.1} parent=27 // pred_check
          %p195 = pneg %p58
        $region30: #{frequency_loss.1} parent=27 // pred_check_branch
          %197 = sbr.rel (%p195) target = $region32
        $region31: #{frequency_loss.1} parent=27 // pred_region
          %198 = dma.done %s191, 1024
        $region32: #{frequency_loss.1} parent=27 // pred_fallthru
          _
        %s199 = sand.u32 %s77, 1
        %s200 = scalar_lea.sflag [#allocation6], %s199
        %s201 = sand.u32 %s77, 1
        %s202 = smul.addr %s201, 64
        %s203 = scalar_lea.vmem [#allocation5], %s202
        // Predicated region
        $region33: #{frequency_loss.1} parent=27 // pred_check
          %p204 = pneg %p90
        $region34: #{frequency_loss.1} parent=27 // pred_check_branch
          %206 = sbr.rel (%p204) target = $region36
        $region35: #{frequency_loss.1} parent=27 // pred_region
          %207 = dma.done %s200, 1024
        $region36: #{frequency_loss.1} parent=27 // pred_fallthru
          _
        %s208 = sand.u32 %s45, 1
        %s209 = scalar_lea.sflag [#allocation4], %s208
        %s210 = sand.u32 %s45, 1
        %s211 = smul.addr %s210, 64
        %s212 = scalar_lea.vmem [#allocation3], %s211
        %p213 = pneg %p58
        %p214 = pneg %p55
        %s215 = sand.u32 %s77, 1
        %s216 = scalar_lea.sflag [#allocation6], %s215
        %s217 = sand.u32 %s77, 1
        %s218 = smul.addr %s217, 64
        %s219 = scalar_lea.vmem [#allocation5], %s218
        %p220 = pneg %p90
        %p221 = pneg %p87
        %p222 = pneg %p116
        %p223 = pneg %p113
        %p224 = scmp.lt.s32.totalorder %s23, 1
        %s225 = scalar_select %p224, %s23, 1
        %s226 = scalar_lea.vmem %s2, %s225
        %s227 = sadd.s32 %s23, %s24
        %p228 = scmp.lt.s32.totalorder %s227, 1
        %s229 = scalar_select %p228, %s227, 1
        %s230 = smul.u32 8, %s229
        %s231 = sadd.s32 %s23, %s24
        %p232 = scmp.lt.s32.totalorder %s231, 1
        %s233 = scalar_select %p232, %s231, 1
        %s234 = smul.u32 8, %s233
        %p235 = scmp.lt.s32.totalorder %s23, 1
        %s236 = scalar_select %p235, %s23, 1
        %s237 = scalar_lea.vmem %s2, %s236
        %p238 = scmp.eq.s32.totalorder %s24, 0
        // Predicated region
        $region37: #{frequency_loss.1} parent=27 // pred_check
          %p239 = pneg %p238
        $region38: #{frequency_loss.1} parent=27 // pred_check_branch
          %241 = sbr.rel (%p239) target = $region40
        $region39: #{frequency_loss.1} parent=27 // pred_region
          %vm242 = vcmask 0
          %243 = vst.msk [vmem:[#allocation2] sm:$0x1] %vm242, 0.0
        $region40: #{frequency_loss.1} parent=27 // pred_fallthru
          _
        %s244 = sadd.s32 %s23, %s24
        %s245 = smul.u32 %s244, 64
        %s246 = ssub.s32 128, %s245
        %v247 = vlaneseq
        %v248 = vshrl.u32 %v247, 7
        %v249 = vadd.s32 %v248, 8
        %v250 = vadd.s32 %v248, 16
        %v251 = vadd.s32 %v248, 24
        %v252 = vadd.s32 %v248, 32
        %v253 = vadd.s32 %v248, 40
        %v254 = vadd.s32 %v248, 48
        %v255 = vadd.s32 %v248, 56
        %v256 = vld [vmem:[%s194] sm:$0xff]
        %v257 = vld [vmem:[%s194 + $0x8] sm:$0xff]
        %v258 = vld [vmem:[%s194 + $0x10] sm:$0xff]
        %v259 = vld [vmem:[%s194 + $0x18] sm:$0xff]
        %v260 = vld [vmem:[%s194 + $0x20] sm:$0xff]
        %v261 = vld [vmem:[%s194 + $0x28] sm:$0xff]
        %v262 = vld [vmem:[%s194 + $0x30] sm:$0xff]
        %v263 = vld [vmem:[%s194 + $0x38] sm:$0xff]
        %v264 = vld [vmem:[%s203] sm:$0xff]
        %v265 = vld [vmem:[%s203 + $0x8] sm:$0xff]
        %v266 = vld [vmem:[%s203 + $0x10] sm:$0xff]
        %v267 = vld [vmem:[%s203 + $0x18] sm:$0xff]
        %v268 = vld [vmem:[%s203 + $0x20] sm:$0xff]
        %v269 = vld [vmem:[%s203 + $0x28] sm:$0xff]
        %v270 = vld [vmem:[%s203 + $0x30] sm:$0xff]
        %v271 = vld [vmem:[%s203 + $0x38] sm:$0xff]
        %v272 = vsub.f32 %v256, %v264
        %v273 = vsub.f32 %v257, %v265
        %v274 = vsub.f32 %v258, %v266
        %v275 = vsub.f32 %v259, %v267
        %v276 = vsub.f32 %v260, %v268
        %v277 = vsub.f32 %v261, %v269
        %v278 = vsub.f32 %v262, %v270
        %v279 = vsub.f32 %v263, %v271
        %v280 = vstv %s246
        %vm281 = vcmp.lt.s32.totalorder %v248, %v280
        %vm282 = vcmp.lt.s32.totalorder %v249, %v280
        %vm283 = vcmp.lt.s32.totalorder %v250, %v280
        %vm284 = vcmp.lt.s32.totalorder %v251, %v280
        %vm285 = vcmp.lt.s32.totalorder %v252, %v280
        %vm286 = vcmp.lt.s32.totalorder %v253, %v280
        %vm287 = vcmp.lt.s32.totalorder %v254, %v280
        %vm288 = vcmp.lt.s32.totalorder %v255, %v280
        %v289 = vsel %vm281, %v272, 0.0
        %v290 = vsel %vm282, %v273, 0.0
        %v291 = vsel %vm283, %v274, 0.0
        %v292 = vsel %vm284, %v275, 0.0
        %v293 = vsel %vm285, %v276, 0.0
        %v294 = vsel %vm286, %v277, 0.0
        %v295 = vsel %vm287, %v278, 0.0
        %v296 = vsel %vm288, %v279, 0.0
        %v297 = vmul.f32 %v289, %v289
        %v298 = vmul.f32 %v290, %v290
        %v299 = vmul.f32 %v291, %v291
        %v300 = vmul.f32 %v292, %v292
        %v301 = vmul.f32 %v293, %v293
        %v302 = vmul.f32 %v294, %v294
        %v303 = vmul.f32 %v295, %v295
        %v304 = vmul.f32 %v296, %v296
        %vm305 = vcmask 130048
        %v306 = vsel %vm305, %v297, 0.0
        %v307 = vsel %vm305, %v298, 0.0
        %v308 = vadd.f32 %v306, %v307
        %v309 = vsel %vm305, %v299, 0.0
        %v310 = vadd.f32 %v308, %v309
        %v311 = vsel %vm305, %v300, 0.0
        %v312 = vadd.f32 %v310, %v311
        %v313 = vsel %vm305, %v301, 0.0
        %v314 = vadd.f32 %v312, %v313
        %v315 = vsel %vm305, %v302, 0.0
        %v316 = vadd.f32 %v314, %v315
        %v317 = vsel %vm305, %v303, 0.0
        %v318 = vadd.f32 %v316, %v317
        %v319 = vsel %vm305, %v304, 0.0
        %v320 = vadd.f32 %v318, %v319
        %v321 = vrot.slane %v320, 4
        %v322 = vadd.f32 %v320, %v321
        %v323 = vrot.slane %v322, 2
        %v324 = vadd.f32 %v322, %v323
        %v325 = vrot.slane %v324, 1
        %v326 = vadd.f32 %v324, %v325
        %v327 = vsel %vm305, %v326, 0.0
        %328 = vadd.xlane.f32.xlu0 %v327
        %v329 = vpop.xlane.xlu0 %328
        %v330 = vsel %vm305, %v289, 0.0
        %331 = vadd.xlane.f32.xlu0 %v330
        %v332 = vpop.xlane.xlu0 %331
        %v333 = vsel %vm305, %v290, 0.0
        %334 = vadd.xlane.f32.xlu0 %v333
        %v335 = vpop.xlane.xlu0 %334
        %v336 = vsel %vm305, %v291, 0.0
        %337 = vadd.xlane.f32.xlu0 %v336
        %v338 = vpop.xlane.xlu0 %337
        %v339 = vsel %vm305, %v292, 0.0
        %340 = vadd.xlane.f32.xlu0 %v339
        %v341 = vpop.xlane.xlu0 %340
        %v342 = vsel %vm305, %v293, 0.0
        %343 = vadd.xlane.f32.xlu0 %v342
        %v344 = vpop.xlane.xlu0 %343
        %v345 = vsel %vm305, %v294, 0.0
        %346 = vadd.xlane.f32.xlu0 %v345
        %v347 = vpop.xlane.xlu0 %346
        %v348 = vsel %vm305, %v295, 0.0
        %349 = vadd.xlane.f32.xlu0 %v348
        %v350 = vpop.xlane.xlu0 %349
        %v351 = vsel %vm305, %v296, 0.0
        %352 = vadd.xlane.f32.xlu0 %v351
        %v353 = vpop.xlane.xlu0 %352
        %v354 = vmul.f32 %v332, %v332
        %v355 = vmul.f32 %v335, %v335
        %v356 = vmul.f32 %v338, %v338
        %v357 = vmul.f32 %v341, %v341
        %v358 = vmul.f32 %v344, %v344
        %v359 = vmul.f32 %v347, %v347
        %v360 = vmul.f32 %v350, %v350
        %v361 = vmul.f32 %v353, %v353
        %v362 = vadd.f32 %v354, %v355
        %v363 = vadd.f32 %v362, %v356
        %v364 = vadd.f32 %v363, %v357
        %v365 = vadd.f32 %v364, %v358
        %v366 = vadd.f32 %v365, %v359
        %v367 = vadd.f32 %v366, %v360
        %v368 = vadd.f32 %v367, %v361
        %v369 = vrot.slane %v368, 4
        %v370 = vadd.f32 %v368, %v369
        %v371 = vrot.slane %v370, 2
        %v372 = vadd.f32 %v370, %v371
        %v373 = vrot.slane %v372, 1
        %v374 = vadd.f32 %v372, %v373
        %v375 = vmul.f32 %v329, 16.0
        %v376 = vadd.f32 %v375, %v374
        %v377 = vlaneseq
        %v378 = vand.u32 %v377, 127
        %vm379 = vcmp.lt.s32.totalorder %v378, 0
        %v380 = vsub.s32 0, %v378
        %v381 = vsel %vm379, %v380, %v378
        %v382 = vshrl.u32 %v381, 1
        %v383 = vand.u32 %v381, 1
        %v384 = vsub.s32 0, %v383
        %v385 = vsel %vm379, %v384, %v383
        %vm386 = vcmp.ne.s32.totalorder %v385, 0
        %vm387 = vcmp.lt.s32.totalorder %v385, 0
        %vm388 = vmand %vm387, %vm386
        %v389 = vadd.s32 %v385, 2
        %v390 = vsel %vm388, %v389, %v385
        %vm391 = vcmp.eq.s32.totalorder %v390, 0
        %v392 = vsel %vm391, 1.0, -1.0
        %v393 = vmul.f32 %v289, %v392
        %v394 = vmul.f32 %v290, %v392
        %v395 = vmul.f32 %v291, %v392
        %v396 = vmul.f32 %v292, %v392
        %v397 = vmul.f32 %v293, %v392
        %v398 = vmul.f32 %v294, %v392
        %v399 = vmul.f32 %v295, %v392
        %v400 = vmul.f32 %v296, %v392
        %v401 = vsel %vm305, %v393, 0.0
        %402 = vadd.xlane.f32.xlu0 %v401
        %v403 = vpop.xlane.xlu0 %402
        %v404 = vsel %vm305, %v394, 0.0
        %405 = vadd.xlane.f32.xlu0 %v404
        %v406 = vpop.xlane.xlu0 %405
        %v407 = vsel %vm305, %v395, 0.0
        %408 = vadd.xlane.f32.xlu0 %v407
        %v409 = vpop.xlane.xlu0 %408
        %v410 = vsel %vm305, %v396, 0.0
        %411 = vadd.xlane.f32.xlu0 %v410
        %v412 = vpop.xlane.xlu0 %411
        %v413 = vsel %vm305, %v397, 0.0
        %414 = vadd.xlane.f32.xlu0 %v413
        %v415 = vpop.xlane.xlu0 %414
        %v416 = vsel %vm305, %v398, 0.0
        %417 = vadd.xlane.f32.xlu0 %v416
        %v418 = vpop.xlane.xlu0 %417
        %v419 = vsel %vm305, %v399, 0.0
        %420 = vadd.xlane.f32.xlu0 %v419
        %v421 = vpop.xlane.xlu0 %420
        %v422 = vsel %vm305, %v400, 0.0
        %423 = vadd.xlane.f32.xlu0 %v422
        %v424 = vpop.xlane.xlu0 %423
        %v425 = vmul.f32 %v403, %v403
        %v426 = vmul.f32 %v406, %v406
        %v427 = vmul.f32 %v409, %v409
        %v428 = vmul.f32 %v412, %v412
        %v429 = vmul.f32 %v415, %v415
        %v430 = vmul.f32 %v418, %v418
        %v431 = vmul.f32 %v421, %v421
        %v432 = vmul.f32 %v424, %v424
        %v433 = vadd.f32 %v425, %v426
        %v434 = vadd.f32 %v433, %v427
        %v435 = vadd.f32 %v434, %v428
        %v436 = vadd.f32 %v435, %v429
        %v437 = vadd.f32 %v436, %v430
        %v438 = vadd.f32 %v437, %v431
        %v439 = vadd.f32 %v438, %v432
        %v440 = vrot.slane %v439, 4
        %v441 = vadd.f32 %v439, %v440
        %v442 = vrot.slane %v441, 2
        %v443 = vadd.f32 %v441, %v442
        %v444 = vrot.slane %v443, 1
        %v445 = vadd.f32 %v443, %v444
        %v446 = vadd.f32 %v376, %v445
        %v447 = vld [vmem:[#allocation2] sm:$0x1]
        %v448 = vadd.f32 %v447, %v446
        %vm449 = vcmask 0
        %450 = vst.msk [vmem:[#allocation2] sm:$0x1] %vm449, %v448
        // Predicated region
        $region41: #{frequency_loss.1} parent=27 // pred_check
          %p451 = pneg %p238
        $region42: #{frequency_loss.1} parent=27 // pred_check_branch
          %453 = sbr.rel (%p451) target = $region44
        $region43: #{frequency_loss.1} parent=27 // pred_region
          %v454 = vld [vmem:[#allocation2] sm:$0x1]
          %455 = vst.msk [vmem:[%s237] sm:$0x1] %vm449, %v454
        $region44: #{frequency_loss.1} parent=27 // pred_fallthru
          _
        %p456 = scmp.lt.s32.totalorder %s23, 1
        %s457 = scalar_select %p456, %s23, 1
        %s458 = scalar_lea.vmem %s2, %s457
        // Predicated region
        $region45: #{frequency_loss.1} parent=27 // pred_check
          %p459 = pneg %p113
        $region46: #{frequency_loss.1} parent=27 // pred_check_branch
          %461 = sbr.rel (%p459) target = $region48
        $region47: #{frequency_loss.1} parent=27 // pred_region
          _
        $region48: #{frequency_loss.1} parent=27 // pred_fallthru
          _
      $region28: #{frequency_loss.1} parent=5 // pred_fallthru
        _
      %p462 = scmp.le.s32.totalorder 2, %s14
      // Predicated region
      $region49: #{frequency_loss.1} parent=5 // pred_check
        %p463 = pneg %p462
      $region50: #{frequency_loss.1} parent=5 // pred_check_branch
        %465 = sbr.rel (%p463) target = $region52
      $region51: #{frequency_loss.1} parent=5 // pred_region
        %s466 = ssub.s32 %s14, 2
        // Predicated region
        $region53: #{frequency_loss.1} parent=51 // pred_check
          %p467 = pneg %p119
        $region54: #{frequency_loss.1} parent=51 // pred_check_branch
          %469 = sbr.rel (%p467) target = $region56
        $region55: #{frequency_loss.1} parent=51 // pred_region
          %p470 = scmp.lt.s32.totalorder %s25, 1
          %s471 = scalar_select %p470, %s25, 1
          %s472 = scalar_lea.vmem %s2, %s471
        $region56: #{frequency_loss.1} parent=51 // pred_fallthru
          _
      $region52: #{frequency_loss.1} parent=5 // pred_fallthru
        _
    $region6: #{frequency_loss.1} parent=1 // loop_footer
      %s18 = sadd.s32 1, %s14
    $region7: #{frequency_loss.1} parent=1 // loop_footer_branch
      %13 = sbr.rel target = $region3
    $region8: #{frequency_loss.1} parent=1 // loop_exit
      _
    %473 = vsyncpa [#allocation4], 1
    %s474 = scalar_lea.sflag [#allocation4], 1
    %475 = vsyncpa %s474, 1
    %476 = vsyncpa [#allocation6], 1
    %s477 = scalar_lea.sflag [#allocation6], 1
    %478 = vsyncpa %s477, 1

</llo_original>
